<compile_context>
chip_gen: v7x
topology: tpu7x:2x2x1
jax: 0.10.0
libtpu: 0.0.40
codegen_flags: <defaults>
</compile_context>

<pallas_src>
import functools

import jax
import jax.numpy as jnp
from jax.experimental import pallas as pl
from jax.experimental.pallas import tpu as pltpu


# ----------------------------- Pallas kernel -------------------------------

def _fused_attention_kernel(x_ref, w1_ref, b1_ref, w2_ref, b2_ref, out_ref,
                            acc_ref, *, inv_hw, steps, num_ops):
    """Fused global-avg-pool + MLP + grouped softmax.

    x_ref:   (B, T_s, C)   spatial tile, channels on lanes
    w1_ref:  (C, 2*S*O)    b1_ref: (1, 2*S*O)
    w2_ref:  (2*S*O, S*O)  b2_ref: (1, S*O)
    out_ref: (B, S*O)      softmax'd per num_ops-wide group
    acc_ref: (B, C) f32    running spatial sum (scratch, persists over grid)
    """
    s = pl.program_id(0)

    @pl.when(s == 0)
    def _init():
        acc_ref[...] = jnp.zeros_like(acc_ref)

    # Running sum over the spatial tile: element-wise VPU adds into (B, C).
    acc_ref[...] += jnp.sum(x_ref[...].astype(jnp.float32), axis=1)

    @pl.when(s == pl.num_programs(0) - 1)
    def _finalize():
        pooled = acc_ref[...] * inv_hw                                   # (B, C)
        h = jnp.dot(pooled, w1_ref[...],
                    preferred_element_type=jnp.float32) + b1_ref[...]    # (B, 2SO)
        h = jnp.maximum(h, 0.0)                                          # ReLU
        logits = (jnp.dot(h, w2_ref[...],
                          preferred_element_type=jnp.float32)
                  + b2_ref[...])                                         # (B, SO)
        # Numerically-stable softmax over each contiguous num_ops-wide group
        # (== softmax over dim=-1 of the (B, steps, num_ops) view).
        # `steps` is small and static -> unrolled static slices.
        for g in range(steps):
            lo = g * num_ops
            seg = logits[:, lo:lo + num_ops]
            m = jnp.max(seg, axis=-1, keepdims=True)
            e = jnp.exp(seg - m)
            out_ref[:, lo:lo + num_ops] = e / jnp.sum(e, axis=-1, keepdims=True)


# ------------------------------- wrapper ------------------------------------

def _pick_spatial_tile(B, C, HW, *, vmem_budget_bytes=8 << 20, max_tile=2048):
    """Largest multiple-of-8 spatial tile whose double-buffered input block
    stays under a conservative budget (safe on v5e/v6e/v7x)."""
    per_row = max(1, 2 * B * C * 4)          # double-buffered f32 bytes / row
    t = vmem_budget_bytes // per_row
    hw8 = ((HW + 7) // 8) * 8
    t = min(t, max_tile, hw8)
    return max(8, (t // 8) * 8)


def attention_layer_forward(x, w1, b1, w2, b2, steps, num_ops, *,
                            spatial_tile=None):
    """x: (B, C, H, W) float32 -> (B, steps, num_ops) float32 (softmax'd)."""
    B, C, H, W = x.shape
    HW = H * W
    out_sz = steps * num_ops
    hidden = 2 * out_sz

    # (B, C, H, W) -> (B, H*W, C): channels on the lane dimension.
    x_t = jnp.transpose(x, (0, 2, 3, 1)).reshape(B, HW, C).astype(jnp.float32)

    tile = spatial_tile if spatial_tile else _pick_spatial_tile(B, C, HW)
    tile = max(8, (min(tile, ((HW + 7) // 8) * 8) // 8) * 8)
    hw_pad = pl.cdiv(HW, tile) * tile
    if hw_pad != HW:
        # Zero padding is exact: it only adds zeros to the running sum; the
        # mean uses the true 1/(H*W) denominator.
        x_t = jnp.pad(x_t, ((0, 0), (0, hw_pad - HW), (0, 0)))
    n_tiles = hw_pad // tile

    kernel = functools.partial(_fused_attention_kernel,
                               inv_hw=1.0 / float(HW),
                               steps=steps, num_ops=num_ops)

    # Double-buffered input block + weights/acc/out headroom, clamped so it is
    # valid on every generation (v5e default scoped limit is 16 MiB, v7x has
    # 64 MiB physical).
    vmem_limit = int(min(max(4 * B * tile * C * 4 + (4 << 20), 8 << 20),
                         48 << 20))

    param_bytes = int((w1.size + b1.size + w2.size + b2.size) * 4)
    cost = pl.CostEstimate(
        flops=int(B * HW * C + 2 * B * C * hidden + 2 * B * hidden * out_sz),
        transcendentals=int(B * out_sz),
        bytes_accessed=int(B * hw_pad * C * 4 + param_bytes + B * out_sz * 4),
    )

    # TODO(synk): for very large B on v7x, add a leading "parallel" batch-tile
    # grid axis to use both TensorCores; omitted here to keep the tiny output
    # block full-array-shaped (avoids sub-(8,128) output blocks).
    probs = pl.pallas_call(
        kernel,
        out_shape=jax.ShapeDtypeStruct((B, out_sz), jnp.float32),
        grid_spec=pltpu.PrefetchScalarGridSpec(
            num_scalar_prefetch=0,
            grid=(n_tiles,),
            in_specs=[
                pl.BlockSpec((B, tile, C), lambda s: (0, s, 0)),
                pl.BlockSpec(w1.shape, lambda s: (0, 0)),
                pl.BlockSpec(b1.shape, lambda s: (0, 0)),
                pl.BlockSpec(w2.shape, lambda s: (0, 0)),
                pl.BlockSpec(b2.shape, lambda s: (0, 0)),
            ],
            out_specs=pl.BlockSpec((B, out_sz), lambda s: (0, 0)),
            scratch_shapes=[pltpu.VMEM((B, C), jnp.float32)],
        ),
        compiler_params=pltpu.CompilerParams(
            dimension_semantics=("arbitrary",),   # spatial axis is a reduction
            vmem_limit_bytes=vmem_limit,
        ),
        cost_estimate=cost,
    )(x_t, w1, b1, w2, b2)

    return probs.reshape(B, steps, num_ops)


# ------------------------------ param init ----------------------------------

def init_params(key, channels, steps, num_ops):
    """PyTorch-Linear-style init, weights stored as (in_features, out_features)."""
    out_sz = steps * num_ops
    hidden = out_sz * 2
    k1, k2, k3, k4 = jax.random.split(key, 4)

    bnd1 = 1.0 / jnp.sqrt(channels)
    w1 = jax.random.uniform(k1, (channels, hidden), jnp.float32, -bnd1, bnd1)
    b1 = jax.random.uniform(k2, (1, hidden), jnp.float32, -bnd1, bnd1)

    bnd2 = 1.0 / jnp.sqrt(hidden)
    w2 = jax.random.uniform(k3, (hidden, out_sz), jnp.float32, -bnd2, bnd2)
    b2 = jax.random.uniform(k4, (1, out_sz), jnp.float32, -bnd2, bnd2)
    return w1, b1, w2, b2


# pure-JAX reference for correctness checking
def reference_forward(x, w1, b1, w2, b2, steps, num_ops):
    B = x.shape[0]
    pooled = jnp.mean(x, axis=(2, 3))                      # (B, C)
    h = jnp.maximum(pooled @ w1 + b1, 0.0)
    logits = (h @ w2 + b2).reshape(B, steps, num_ops)
    return jax.nn.softmax(logits, axis=-1)


if __name__ == "__main__":
    # module config
    channels, steps, num_ops = 4, 3, 4
    B, H, W = 2, 16, 16

    key = jax.random.PRNGKey(0)
    kx, kp = jax.random.split(key)
    x = jax.random.normal(kx, (B, channels, H, W), jnp.float32)
    w1, b1, w2, b2 = init_params(kp, channels, steps, num_ops)

    # tile=96: exercises multi-step accumulation AND the zero-padded last tile
    # (H*W = 256 -> padded to 288, 3 grid steps).
    out = attention_layer_forward(x, w1, b1, w2, b2, steps, num_ops,
                                  spatial_tile=96)
    out = jax.block_until_ready(out)

    ref = reference_forward(x, w1, b1, w2, b2, steps, num_ops)
    assert out.shape == (B, steps, num_ops)
    assert jnp.allclose(out, ref, atol=1e-5, rtol=1e-5), "mismatch vs reference"
    # each num_ops group sums to 1
    assert jnp.allclose(jnp.sum(out, axis=-1), 1.0, atol=1e-5)

    # also check the auto-picked tile path (single large tile for this size)
    out2 = attention_layer_forward(x, w1, b1, w2, b2, steps, num_ops)
    out2 = jax.block_until_ready(out2)
    assert jnp.allclose(out2, ref, atol=1e-5, rtol=1e-5), "mismatch (auto tile)"

    print("KERNEL_OK")
</pallas_src>

<mosaic_0001>
module attributes {stable_mosaic.version = 11 : i64} {
  func.func @_fused_attention_kernel(%arg0: i32, %arg1: memref<2x96x4xf32, #tpu.memory_space<vmem>>, %arg2: memref<4x24xf32, #tpu.memory_space<vmem>>, %arg3: memref<1x24xf32, #tpu.memory_space<vmem>>, %arg4: memref<24x12xf32, #tpu.memory_space<vmem>>, %arg5: memref<1x12xf32, #tpu.memory_space<vmem>>, %arg6: memref<2x12xf32, #tpu.memory_space<vmem>>, %arg7: memref<2x4xf32, #tpu.memory_space<vmem>>) attributes {dimension_semantics = [#tpu.dimension_semantics<arbitrary>], iteration_bounds = array<i64: 3>, scalar_prefetch = 0 : i64, scratch_operands = 1 : i64, tpu.core_type = #tpu.core_type<tc>, window_params = [{transform_indices = @transform_0, window_bounds = array<i64: 2, 96, 4>}, {pipeline_mode = #tpu.pipeline_mode<synchronous>, transform_indices = @transform_1, window_bounds = array<i64: 4, 24>}, {pipeline_mode = #tpu.pipeline_mode<synchronous>, transform_indices = @transform_2, window_bounds = array<i64: 1, 24>}, {pipeline_mode = #tpu.pipeline_mode<synchronous>, transform_indices = @transform_3, window_bounds = array<i64: 24, 12>}, {pipeline_mode = #tpu.pipeline_mode<synchronous>, transform_indices = @transform_4, window_bounds = array<i64: 1, 12>}, {pipeline_mode = #tpu.pipeline_mode<synchronous>, transform_indices = @transform_5, window_bounds = array<i64: 2, 12>}]} {
    %c0_i32 = arith.constant 0 : i32
    %0 = arith.cmpi eq, %arg0, %c0_i32 : i32
    %1 = arith.extui %0 : i1 to i32
    %c0_i32_0 = arith.constant 0 : i32
    %2 = arith.cmpi ne, %1, %c0_i32_0 : i32
    scf.if %2 {
      %cst_8 = arith.constant 0.000000e+00 : f32
      %11 = vector.broadcast %cst_8 : f32 to vector<2x4xf32>
      %c0_9 = arith.constant 0 : index
      %c0_10 = arith.constant 0 : index
      %12 = vector.load %arg7[%c0_9, %c0_10] : memref<2x4xf32, #tpu.memory_space<vmem>>, vector<2x4xf32>
      tpu.vector_store %arg7[%c0_9, %c0_10], %11 {strides = array<i32>} : memref<2x4xf32, #tpu.memory_space<vmem>>, vector<2x4xf32>,
    } else {
    }
    %c0 = arith.constant 0 : index
    %c0_1 = arith.constant 0 : index
    %3 = vector.load %arg7[%c0, %c0_1] : memref<2x4xf32, #tpu.memory_space<vmem>>, vector<2x4xf32>
    %c0_2 = arith.constant 0 : index
    %c0_3 = arith.constant 0 : index
    %c0_4 = arith.constant 0 : index
    %4 = vector.load %arg1[%c0_2, %c0_3, %c0_4] : memref<2x96x4xf32, #tpu.memory_space<vmem>>, vector<2x96x4xf32>
    %cst = arith.constant dense<0.000000e+00> : vector<2x4xf32>
    %5 = vector.multi_reduction <add>, %4, %cst [1] : vector<2x96x4xf32> to vector<2x4xf32>
    %6 = arith.addf %3, %5 : vector<2x4xf32>
    %c0_5 = arith.constant 0 : index
    %c0_6 = arith.constant 0 : index
    %7 = vector.load %arg7[%c0_5, %c0_6] : memref<2x4xf32, #tpu.memory_space<vmem>>, vector<2x4xf32>
    tpu.vector_store %arg7[%c0_5, %c0_6], %6 {strides = array<i32>} : memref<2x4xf32, #tpu.memory_space<vmem>>, vector<2x4xf32>,
    %c2_i32 = arith.constant 2 : i32
    %8 = arith.cmpi eq, %arg0, %c2_i32 : i32
    %9 = arith.extui %8 : i1 to i32
    %c0_i32_7 = arith.constant 0 : i32
    %10 = arith.cmpi ne, %9, %c0_i32_7 : i32
    scf.if %10 {
      %c0_8 = arith.constant 0 : index
      %c0_9 = arith.constant 0 : index
      %11 = vector.load %arg7[%c0_8, %c0_9] : memref<2x4xf32, #tpu.memory_space<vmem>>, vector<2x4xf32>
      %cst_10 = arith.constant 3.906250e-03 : f32
      %12 = vector.broadcast %cst_10 : f32 to vector<2x4xf32>
      %13 = arith.mulf %11, %12 : vector<2x4xf32>
      %c0_11 = arith.constant 0 : index
      %c0_12 = arith.constant 0 : index
      %14 = vector.load %arg2[%c0_11, %c0_12] : memref<4x24xf32, #tpu.memory_space<vmem>>, vector<4x24xf32>
      %cst_13 = arith.constant dense<0.000000e+00> : vector<2x24xf32>
      %15 = tpu.matmul %13, %14, %cst_13 {dimension_numbers = #tpu.dot_dimension_numbers<[1], [0], [0], [1], [0, 0, 1, 1], [], []>} : vector<2x4xf32>, vector<4x24xf32>, vector<2x24xf32> -> vector<2x24xf32>
      %c0_14 = arith.constant 0 : index
      %c0_15 = arith.constant 0 : index
      %16 = vector.load %arg3[%c0_14, %c0_15] : memref<1x24xf32, #tpu.memory_space<vmem>>, vector<1x24xf32>
      %17 = vector.broadcast %16 : vector<1x24xf32> to vector<2x24xf32>
      %18 = arith.addf %15, %17 : vector<2x24xf32>
      %cst_16 = arith.constant 0.000000e+00 : f32
      %19 = vector.broadcast %cst_16 : f32 to vector<2x24xf32>
      %20 = arith.maximumf %18, %19 : vector<2x24xf32>
      %c0_17 = arith.constant 0 : index
      %c0_18 = arith.constant 0 : index
      %21 = vector.load %arg4[%c0_17, %c0_18] : memref<24x12xf32, #tpu.memory_space<vmem>>, vector<24x12xf32>
      %cst_19 = arith.constant dense<0.000000e+00> : vector<2x12xf32>
      %22 = tpu.matmul %20, %21, %cst_19 {dimension_numbers = #tpu.dot_dimension_numbers<[1], [0], [0], [1], [0, 0, 1, 1], [], []>} : vector<2x24xf32>, vector<24x12xf32>, vector<2x12xf32> -> vector<2x12xf32>
      %c0_20 = arith.constant 0 : index
      %c0_21 = arith.constant 0 : index
      %23 = vector.load %arg5[%c0_20, %c0_21] : memref<1x12xf32, #tpu.memory_space<vmem>>, vector<1x12xf32>
      %24 = vector.broadcast %23 : vector<1x12xf32> to vector<2x12xf32>
      %25 = arith.addf %22, %24 : vector<2x12xf32>
      %26 = vector.extract_strided_slice %25 {offsets = [0, 0], sizes = [2, 4], strides = [1, 1]} : vector<2x12xf32> to vector<2x4xf32>
      %cst_22 = arith.constant dense<0xFF800000> : vector<2xf32>
      %27 = vector.multi_reduction <maximumf>, %26, %cst_22 [1] : vector<2x4xf32> to vector<2xf32>
      %28 = vector.shape_cast %27 : vector<2xf32> to vector<2x1xf32>
      %29 = vector.broadcast %28 : vector<2x1xf32> to vector<2x4xf32>
      %30 = arith.subf %26, %29 : vector<2x4xf32>
      %31 = math.exp %30 : vector<2x4xf32>
      %cst_23 = arith.constant dense<0.000000e+00> : vector<2xf32>
      %32 = vector.multi_reduction <add>, %31, %cst_23 [1] : vector<2x4xf32> to vector<2xf32>
      %33 = vector.shape_cast %32 : vector<2xf32> to vector<2x1xf32>
      %34 = vector.broadcast %33 : vector<2x1xf32> to vector<2x4xf32>
      %35 = arith.divf %31, %34 : vector<2x4xf32>
      %c0_24 = arith.constant 0 : index
      %c0_25 = arith.constant 0 : index
      %36 = vector.load %arg6[%c0_24, %c0_25] : memref<2x12xf32, #tpu.memory_space<vmem>>, vector<2x4xf32>
      tpu.vector_store %arg6[%c0_24, %c0_25], %35 {strides = array<i32>} : memref<2x12xf32, #tpu.memory_space<vmem>>, vector<2x4xf32>,
      %37 = vector.extract_strided_slice %25 {offsets = [0, 4], sizes = [2, 4], strides = [1, 1]} : vector<2x12xf32> to vector<2x4xf32>
      %cst_26 = arith.constant dense<0xFF800000> : vector<2xf32>
      %38 = vector.multi_reduction <maximumf>, %37, %cst_26 [1] : vector<2x4xf32> to vector<2xf32>
      %39 = vector.shape_cast %38 : vector<2xf32> to vector<2x1xf32>
      %40 = vector.broadcast %39 : vector<2x1xf32> to vector<2x4xf32>
      %41 = arith.subf %37, %40 : vector<2x4xf32>
      %42 = math.exp %41 : vector<2x4xf32>
      %cst_27 = arith.constant dense<0.000000e+00> : vector<2xf32>
      %43 = vector.multi_reduction <add>, %42, %cst_27 [1] : vector<2x4xf32> to vector<2xf32>
      %44 = vector.shape_cast %43 : vector<2xf32> to vector<2x1xf32>
      %45 = vector.broadcast %44 : vector<2x1xf32> to vector<2x4xf32>
      %46 = arith.divf %42, %45 : vector<2x4xf32>
      %c0_28 = arith.constant 0 : index
      %c4 = arith.constant 4 : index
      %47 = vector.load %arg6[%c0_28, %c4] : memref<2x12xf32, #tpu.memory_space<vmem>>, vector<2x4xf32>
      tpu.vector_store %arg6[%c0_28, %c4], %46 {strides = array<i32>} : memref<2x12xf32, #tpu.memory_space<vmem>>, vector<2x4xf32>,
      %48 = vector.extract_strided_slice %25 {offsets = [0, 8], sizes = [2, 4], strides = [1, 1]} : vector<2x12xf32> to vector<2x4xf32>
      %cst_29 = arith.constant dense<0xFF800000> : vector<2xf32>
      %49 = vector.multi_reduction <maximumf>, %48, %cst_29 [1] : vector<2x4xf32> to vector<2xf32>
      %50 = vector.shape_cast %49 : vector<2xf32> to vector<2x1xf32>
      %51 = vector.broadcast %50 : vector<2x1xf32> to vector<2x4xf32>
      %52 = arith.subf %48, %51 : vector<2x4xf32>
      %53 = math.exp %52 : vector<2x4xf32>
      %cst_30 = arith.constant dense<0.000000e+00> : vector<2xf32>
      %54 = vector.multi_reduction <add>, %53, %cst_30 [1] : vector<2x4xf32> to vector<2xf32>
      %55 = vector.shape_cast %54 : vector<2xf32> to vector<2x1xf32>
      %56 = vector.broadcast %55 : vector<2x1xf32> to vector<2x4xf32>
      %57 = arith.divf %53, %56 : vector<2x4xf32>
      %c0_31 = arith.constant 0 : index
      %c8 = arith.constant 8 : index
      %58 = vector.load %arg6[%c0_31, %c8] : memref<2x12xf32, #tpu.memory_space<vmem>>, vector<2x4xf32>
      tpu.vector_store %arg6[%c0_31, %c8], %57 {strides = array<i32>} : memref<2x12xf32, #tpu.memory_space<vmem>>, vector<2x4xf32>,
    } else {
    }
    return
  }
  func.func @transform_0(%arg0: i32) -> (i32, i32, i32) {
    %c0_i32 = arith.constant 0 : i32
    %c0_i32_0 = arith.constant 0 : i32
    %c0_i32_1 = arith.constant 0 : i32
    return %c0_i32, %arg0, %c0_i32_0 : i32, i32, i32
  }
  func.func @transform_1(%arg0: i32) -> (i32, i32) {
    %c0_i32 = arith.constant 0 : i32
    %c0_i32_0 = arith.constant 0 : i32
    %c0_i32_1 = arith.constant 0 : i32
    return %c0_i32, %c0_i32_0 : i32, i32
  }
  func.func @transform_2(%arg0: i32) -> (i32, i32) {
    %c0_i32 = arith.constant 0 : i32
    %c0_i32_0 = arith.constant 0 : i32
    %c0_i32_1 = arith.constant 0 : i32
    return %c0_i32, %c0_i32_0 : i32, i32
  }
  func.func @transform_3(%arg0: i32) -> (i32, i32) {
    %c0_i32 = arith.constant 0 : i32
    %c0_i32_0 = arith.constant 0 : i32
    %c0_i32_1 = arith.constant 0 : i32
    return %c0_i32, %c0_i32_0 : i32, i32
  }
  func.func @transform_4(%arg0: i32) -> (i32, i32) {
    %c0_i32 = arith.constant 0 : i32
    %c0_i32_0 = arith.constant 0 : i32
    %c0_i32_1 = arith.constant 0 : i32
    return %c0_i32, %c0_i32_0 : i32, i32
  }
  func.func @transform_5(%arg0: i32) -> (i32, i32) {
    %c0_i32 = arith.constant 0 : i32
    %c0_i32_0 = arith.constant 0 : i32
    %c0_i32_1 = arith.constant 0 : i32
    return %c0_i32, %c0_i32_0 : i32, i32
  }
}

</mosaic_0001>

<llo_original>
// kernel: tpu_custom_call.1
$region0: #{tpu_custom_call.1}
  #allocation0 [shape = 'u32[]', space=smem, size = 0x4, offset = 0x4, fixed_abs, tag = 'smem constant byte address 0x4 - core index']
  #allocation1 [shape = 'u32[144,128]{1,0:T(1,128)}', space=vmem, size = 0x12000, scoped, tag = 'internal scratch']
  #allocation2 [shape = 'f32[2,4]{1,0:T(2,128)}', space=vmem, size = 0x400, scoped, tag = 'scratch operand']
  %s0 = inlined_call_operand.vmem [shape: f32[2,288,4], index: 0, kind: input, shape index: {}]
  %s1 = inlined_call_operand.vmem [shape: f32[4,24], index: 1, kind: input, shape index: {}]
  %s2 = inlined_call_operand.vmem [shape: f32[1,24], index: 2, kind: input, shape index: {}]
  %s3 = inlined_call_operand.vmem [shape: f32[24,12], index: 3, kind: input, shape index: {}]
  %s4 = inlined_call_operand.vmem [shape: f32[1,12], index: 4, kind: input, shape index: {}]
  %s5 = inlined_call_operand.hbm [shape: f32[2,12], index: 5, kind: output, shape index: {}]
  %s6 = sld [smem:[#allocation0]]
  $region99: #{tpu_custom_call.1} parent=0
    _
  %s8 = ssub.s32 1, %s6
  %s9 = scalar_select 0, %s8, %s6
  $region1: #{tpu_custom_call.1} parent=0
    #allocation3 [shape = 'u8[196608]{0}', space=vmem, size = 0x30000, scoped, tag = 'input window, operand 0']
    #allocation4 [shape = 'u8[1024]{0}', space=vmem, size = 0x400, scoped, tag = 'output window, operand 0, single buffered']
    #allocation5 [shape = 's32[2]{0}', space=sflag, size = 0x8, scoped, tag = 'scoped memory for tpu_custom_call.1']
    %10 = vsyncpa [#allocation5], 0
    loop: start=0, step=1, limit=5
    $region2: #{tpu_custom_call.1} parent=1 // loop_pre_header
      _
    $region3: #{tpu_custom_call.1} parent=1 // loop_header
      %s12 = sphi 0, %s16
      %p13 = scmp.ge.s32.totalorder %s12, 5
      %s22 = sphi 0, %s24
      %s25 = sphi 0, %s22
      %s26 = sphi 0, %s25
      %s42 = sphi 0, %s26
      %s46 = sphi 0, %s46
      %s48 = sphi 0, %s46
      %s49 = sphi 0, %s48
      %s63 = sphi 0, %s49
      %s67 = sphi 0, %s67
      %s69 = sphi 0, %s67
      %s70 = sphi 0, %s69
      %s84 = sphi 0, %s70
      %s88 = sphi 0, %s88
      %s90 = sphi 0, %s88
      %s91 = sphi 0, %s90
      %s105 = sphi 0, %s91
      %s109 = sphi 0, %s109
      %s111 = sphi 0, %s109
      %s112 = sphi 0, %s111
      %s126 = sphi 0, %s112
      %s130 = sphi 0, %s130
      %s132 = sphi 0, %s130
      %s133 = sphi 0, %s132
      %s147 = sphi 0, %s133
    $region4: #{tpu_custom_call.1} parent=1 // loop_header_branch
      %15 = sbr.rel (%p13) target = $region8
    $region5: #{tpu_custom_call.1} parent=1 // loop_body
      %s17 = ssub.s32 %s12, 1
      %s18 = ssub.s32 %s12, 2
      %s19 = sadd.s32 %s12, 1
      %s20 = ssub.s32 %s12, %s19
      %p21 = scmp.eq.s32.totalorder %s20, 0
      %s23 = sadd.s32 %s22, 1
      %s24 = scalar_select %p21, %s22, %s23
      %p27 = pneg %p21
      %p28 = scmp.eq.s32.totalorder %s12, 2
      %p29 = por %p27, %p28
      %p30 = scmp.ne.s32.totalorder %s22, %s25
      %p31 = scmp.eq.s32.totalorder %s12, 0
      %p32 = por %p30, %p31
      %p33 = scmp.ne.s32.totalorder %s22, %s25
      %p34 = scmp.eq.s32.totalorder %s17, 2
      %p35 = por %p33, %p34
      %p36 = scmp.ne.s32.totalorder %s25, %s26
      %p37 = scmp.eq.s32.totalorder %s17, 0
      %p38 = por %p36, %p37
      %p39 = scmp.ne.s32.totalorder %s25, %s26
      %p40 = scmp.eq.s32.totalorder %s18, 2
      %p41 = por %p39, %p40
      %p43 = scmp.ne.s32.totalorder %s26, %s42
      %p44 = scmp.eq.s32.totalorder %s18, 0
      %p45 = por %p43, %p44
      %s47 = sadd.s32 %s46, 1
      %p50 = scmp.eq.s32.totalorder %s12, 2
      %p51 = scmp.ne.s32.totalorder %s46, %s48
      %p52 = scmp.eq.s32.totalorder %s12, 0
      %p53 = por %p51, %p52
      %p54 = scmp.ne.s32.totalorder %s46, %s48
      %p55 = scmp.eq.s32.totalorder %s17, 2
      %p56 = por %p54, %p55
      %p57 = scmp.ne.s32.totalorder %s48, %s49
      %p58 = scmp.eq.s32.totalorder %s17, 0
      %p59 = por %p57, %p58
      %p60 = scmp.ne.s32.totalorder %s48, %s49
      %p61 = scmp.eq.s32.totalorder %s18, 2
      %p62 = por %p60, %p61
      %p64 = scmp.ne.s32.totalorder %s49, %s63
      %p65 = scmp.eq.s32.totalorder %s18, 0
      %p66 = por %p64, %p65
      %s68 = sadd.s32 %s67, 1
      %p71 = scmp.eq.s32.totalorder %s12, 2
      %p72 = scmp.ne.s32.totalorder %s67, %s69
      %p73 = scmp.eq.s32.totalorder %s12, 0
      %p74 = por %p72, %p73
      %p75 = scmp.ne.s32.totalorder %s67, %s69
      %p76 = scmp.eq.s32.totalorder %s17, 2
      %p77 = por %p75, %p76
      %p78 = scmp.ne.s32.totalorder %s69, %s70
      %p79 = scmp.eq.s32.totalorder %s17, 0
      %p80 = por %p78, %p79
      %p81 = scmp.ne.s32.totalorder %s69, %s70
      %p82 = scmp.eq.s32.totalorder %s18, 2
      %p83 = por %p81, %p82
      %p85 = scmp.ne.s32.totalorder %s70, %s84
      %p86 = scmp.eq.s32.totalorder %s18, 0
      %p87 = por %p85, %p86
      %s89 = sadd.s32 %s88, 1
      %p92 = scmp.eq.s32.totalorder %s12, 2
      %p93 = scmp.ne.s32.totalorder %s88, %s90
      %p94 = scmp.eq.s32.totalorder %s12, 0
      %p95 = por %p93, %p94
      %p96 = scmp.ne.s32.totalorder %s88, %s90
      %p97 = scmp.eq.s32.totalorder %s17, 2
      %p98 = por %p96, %p97
      %p99 = scmp.ne.s32.totalorder %s90, %s91
      %p100 = scmp.eq.s32.totalorder %s17, 0
      %p101 = por %p99, %p100
      %p102 = scmp.ne.s32.totalorder %s90, %s91
      %p103 = scmp.eq.s32.totalorder %s18, 2
      %p104 = por %p102, %p103
      %p106 = scmp.ne.s32.totalorder %s91, %s105
      %p107 = scmp.eq.s32.totalorder %s18, 0
      %p108 = por %p106, %p107
      %s110 = sadd.s32 %s109, 1
      %p113 = scmp.eq.s32.totalorder %s12, 2
      %p114 = scmp.ne.s32.totalorder %s109, %s111
      %p115 = scmp.eq.s32.totalorder %s12, 0
      %p116 = por %p114, %p115
      %p117 = scmp.ne.s32.totalorder %s109, %s111
      %p118 = scmp.eq.s32.totalorder %s17, 2
      %p119 = por %p117, %p118
      %p120 = scmp.ne.s32.totalorder %s111, %s112
      %p121 = scmp.eq.s32.totalorder %s17, 0
      %p122 = por %p120, %p121
      %p123 = scmp.ne.s32.totalorder %s111, %s112
      %p124 = scmp.eq.s32.totalorder %s18, 2
      %p125 = por %p123, %p124
      %p127 = scmp.ne.s32.totalorder %s112, %s126
      %p128 = scmp.eq.s32.totalorder %s18, 0
      %p129 = por %p127, %p128
      %s131 = sadd.s32 %s130, 1
      %p134 = scmp.eq.s32.totalorder %s12, 2
      %p135 = scmp.ne.s32.totalorder %s130, %s132
      %p136 = scmp.eq.s32.totalorder %s12, 0
      %p137 = por %p135, %p136
      %p138 = scmp.ne.s32.totalorder %s130, %s132
      %p139 = scmp.eq.s32.totalorder %s17, 2
      %p140 = por %p138, %p139
      %p141 = scmp.ne.s32.totalorder %s132, %s133
      %p142 = scmp.eq.s32.totalorder %s17, 0
      %p143 = por %p141, %p142
      %p144 = scmp.ne.s32.totalorder %s132, %s133
      %p145 = scmp.eq.s32.totalorder %s18, 2
      %p146 = por %p144, %p145
      %p148 = scmp.ne.s32.totalorder %s133, %s147
      %p149 = scmp.eq.s32.totalorder %s18, 0
      %p150 = por %p148, %p149
      %p151 = scmp.le.s32.totalorder 1, %s12
      %p152 = scmp.lt.s32.totalorder %s12, 4
      %p153 = pnand %p151, %p152
      %p154 = pneg %p153
      // Predicated region
      $region9: #{tpu_custom_call.1} parent=5 // pred_check
        _
      $region10: #{tpu_custom_call.1} parent=5 // pred_check_branch
        %156 = sbr.rel (%p153) target = $region12
      $region11: #{tpu_custom_call.1} parent=5 // pred_region
        %s157 = ssub.s32 %s12, 1
        // Predicated region
        $region13: #{tpu_custom_call.1} parent=11 // pred_check
          %p158 = pneg %p59
        $region14: #{tpu_custom_call.1} parent=11 // pred_check_branch
          %160 = sbr.rel (%p158) target = $region16
        $region15: #{tpu_custom_call.1} parent=11 // pred_region
          _
        $region16: #{tpu_custom_call.1} parent=11 // pred_fallthru
          _
        // Predicated region
        $region17: #{tpu_custom_call.1} parent=11 // pred_check
          %p161 = pneg %p80
        $region18: #{tpu_custom_call.1} parent=11 // pred_check_branch
          %163 = sbr.rel (%p161) target = $region20
        $region19: #{tpu_custom_call.1} parent=11 // pred_region
          _
        $region20: #{tpu_custom_call.1} parent=11 // pred_fallthru
          _
        // Predicated region
        $region21: #{tpu_custom_call.1} parent=11 // pred_check
          %p164 = pneg %p101
        $region22: #{tpu_custom_call.1} parent=11 // pred_check_branch
          %166 = sbr.rel (%p164) target = $region24
        $region23: #{tpu_custom_call.1} parent=11 // pred_region
          _
        $region24: #{tpu_custom_call.1} parent=11 // pred_fallthru
          _
        // Predicated region
        $region25: #{tpu_custom_call.1} parent=11 // pred_check
          %p167 = pneg %p122
        $region26: #{tpu_custom_call.1} parent=11 // pred_check_branch
          %169 = sbr.rel (%p167) target = $region28
        $region27: #{tpu_custom_call.1} parent=11 // pred_region
          _
        $region28: #{tpu_custom_call.1} parent=11 // pred_fallthru
          _
      $region12: #{tpu_custom_call.1} parent=5 // pred_fallthru
        _
      %p170 = scmp.lt.s32.totalorder %s12, 3
      // Predicated region
      $region29: #{tpu_custom_call.1} parent=5 // pred_check
        %p171 = pneg %p170
      $region30: #{tpu_custom_call.1} parent=5 // pred_check_branch
        %173 = sbr.rel (%p171) target = $region32
      $region31: #{tpu_custom_call.1} parent=5 // pred_region
        // Predicated region
        $region33: #{tpu_custom_call.1} parent=31 // pred_check
          %p174 = pneg %p32
        $region34: #{tpu_custom_call.1} parent=31 // pred_check_branch
          %176 = sbr.rel (%p174) target = $region36
        $region35: #{tpu_custom_call.1} parent=31 // pred_region
          %s177 = sand.u32 %s22, 1
          %s178 = sand.u32 %s22, 1
          %s179 = smul.addr %s178, 192
          %s180 = scalar_lea.vmem [#allocation3], %s179
          %s181 = smul.u32 12, %s12
          %s182 = smul.addr %s181, 8
          %s183 = scalar_lea.vmem %s0, %s182
          // Predicated region
          $region37: #{tpu_custom_call.1} parent=35 // pred_check
            _
          $region38: #{tpu_custom_call.1} parent=35 // pred_check_branch
            %185 = sbr.rel (0) target = $region40
          $region39: #{tpu_custom_call.1} parent=35 // pred_region
            // Predicated region
            $region41: #{tpu_custom_call.1} parent=39 // pred_check
              _
            $region42: #{tpu_custom_call.1} parent=39 // pred_check_branch
              %187 = sbr.rel (0) target = $region44
            $region43: #{tpu_custom_call.1} parent=39 // pred_region
              // Predicated region
              $region56: #{tpu_custom_call.1} parent=43 // pred_check
                _
              $region57: #{tpu_custom_call.1} parent=43 // pred_check_branch
                %248 = sbr.rel (0) target = $region59
              $region58: #{tpu_custom_call.1} parent=43 // pred_region
                loop: start=0, step=1, limit=1
                $region60: #{tpu_custom_call.1} parent=58 // loop_pre_header
                  _
                $region61: #{tpu_custom_call.1} parent=58 // loop_header
                  %s250 = sphi 0, %s254
                  %p251 = scmp.ge.s32.totalorder %s250, 1
                  %s255 = sphi %s183, %s183
                  %s256 = sphi %s180, %s180
                $region62: #{tpu_custom_call.1} parent=58 // loop_header_branch
                  %253 = sbr.rel (%p251) target = $region66
                $region63: #{tpu_custom_call.1} parent=58 // loop_body
                  %v257 = vld [vmem:[%s255] sm:$0xff]
                  %258 = vst [vmem:[%s256] sm:$0xff] %v257
                  %v259 = vld [vmem:[%s255 + $0x8] sm:$0xff]
                  %260 = vst [vmem:[%s256 + $0x8] sm:$0xff] %v259
                  %v261 = vld [vmem:[%s255 + $0x10] sm:$0xff]
                  %262 = vst [vmem:[%s256 + $0x10] sm:$0xff] %v261
                  %v263 = vld [vmem:[%s255 + $0x18] sm:$0xff]
                  %264 = vst [vmem:[%s256 + $0x18] sm:$0xff] %v263
                  %v265 = vld [vmem:[%s255 + $0x20] sm:$0xff]
                  %266 = vst [vmem:[%s256 + $0x20] sm:$0xff] %v265
                  %v267 = vld [vmem:[%s255 + $0x28] sm:$0xff]
                  %268 = vst [vmem:[%s256 + $0x28] sm:$0xff] %v267
                  %v269 = vld [vmem:[%s255 + $0x30] sm:$0xff]
                  %270 = vst [vmem:[%s256 + $0x30] sm:$0xff] %v269
                  %v271 = vld [vmem:[%s255 + $0x38] sm:$0xff]
                  %272 = vst [vmem:[%s256 + $0x38] sm:$0xff] %v271
                  %v273 = vld [vmem:[%s255 + $0x40] sm:$0xff]
                  %274 = vst [vmem:[%s256 + $0x40] sm:$0xff] %v273
                  %v275 = vld [vmem:[%s255 + $0x48] sm:$0xff]
                  %276 = vst [vmem:[%s256 + $0x48] sm:$0xff] %v275
                  %v277 = vld [vmem:[%s255 + $0x50] sm:$0xff]
                  %278 = vst [vmem:[%s256 + $0x50] sm:$0xff] %v277
                  %v279 = vld [vmem:[%s255 + $0x58] sm:$0xff]
                  %280 = vst [vmem:[%s256 + $0x58] sm:$0xff] %v279
                  %v281 = vld [vmem:[%s255 + $0x120] sm:$0xff]
                  %282 = vst [vmem:[%s256 + $0x60] sm:$0xff] %v281
                  %v283 = vld [vmem:[%s255 + $0x128] sm:$0xff]
                  %284 = vst [vmem:[%s256 + $0x68] sm:$0xff] %v283
                  %v285 = vld [vmem:[%s255 + $0x130] sm:$0xff]
                  %286 = vst [vmem:[%s256 + $0x70] sm:$0xff] %v285
                  %v287 = vld [vmem:[%s255 + $0x138] sm:$0xff]
                  %288 = vst [vmem:[%s256 + $0x78] sm:$0xff] %v287
                  %v289 = vld [vmem:[%s255 + $0x140] sm:$0xff]
                  %290 = vst [vmem:[%s256 + $0x80] sm:$0xff] %v289
                  %v291 = vld [vmem:[%s255 + $0x148] sm:$0xff]
                  %292 = vst [vmem:[%s256 + $0x88] sm:$0xff] %v291
                  %v293 = vld [vmem:[%s255 + $0x150] sm:$0xff]
                  %294 = vst [vmem:[%s256 + $0x90] sm:$0xff] %v293
                  %v295 = vld [vmem:[%s255 + $0x158] sm:$0xff]
                  %296 = vst [vmem:[%s256 + $0x98] sm:$0xff] %v295
                  %v297 = vld [vmem:[%s255 + $0x160] sm:$0xff]
                  %298 = vst [vmem:[%s256 + $0xa0] sm:$0xff] %v297
                  %v299 = vld [vmem:[%s255 + $0x168] sm:$0xff]
                  %300 = vst [vmem:[%s256 + $0xa8] sm:$0xff] %v299
                  %v301 = vld [vmem:[%s255 + $0x170] sm:$0xff]
                  %302 = vst [vmem:[%s256 + $0xb0] sm:$0xff] %v301
                  %v303 = vld [vmem:[%s255 + $0x178] sm:$0xff]
                  %304 = vst [vmem:[%s256 + $0xb8] sm:$0xff] %v303
                $region64: #{tpu_custom_call.1} parent=58 // loop_footer
                  %s254 = sadd.s32 1, %s250
                $region65: #{tpu_custom_call.1} parent=58 // loop_footer_branch
                  %249 = sbr.rel target = $region61
                $region66: #{tpu_custom_call.1} parent=58 // loop_exit
                  _
              $region59: #{tpu_custom_call.1} parent=43 // pred_fallthru
                _
              // Predicated region
              $region67: #{tpu_custom_call.1} parent=43 // pred_check
                _
              $region68: #{tpu_custom_call.1} parent=43 // pred_check_branch
                %306 = sbr.rel target = $region70
              $region69: #{tpu_custom_call.1} parent=43 // pred_region
                _
              $region70: #{tpu_custom_call.1} parent=43 // pred_fallthru
                _
            $region44: #{tpu_custom_call.1} parent=39 // pred_fallthru
              _
            // Predicated region
            $region45: #{tpu_custom_call.1} parent=39 // pred_check
              _
            $region46: #{tpu_custom_call.1} parent=39 // pred_check_branch
              %189 = sbr.rel target = $region48
            $region47: #{tpu_custom_call.1} parent=39 // pred_region
              loop: start=0, step=1, limit=1
              $region49: #{tpu_custom_call.1} parent=47 // loop_pre_header
                _
              $region50: #{tpu_custom_call.1} parent=47 // loop_header
                %s192 = sphi 0, %s196
                %p193 = scmp.ge.s32.totalorder %s192, 1
                %s197 = sphi %s183, %s183
                %s198 = sphi %s180, %s180
              $region51: #{tpu_custom_call.1} parent=47 // loop_header_branch
                %195 = sbr.rel (%p193) target = $region55
              $region52: #{tpu_custom_call.1} parent=47 // loop_body
                %v199 = vld [vmem:[%s197] sm:$0xff]
                %200 = vst [vmem:[%s198] sm:$0xff] %v199
                %v201 = vld [vmem:[%s197 + $0x8] sm:$0xff]
                %202 = vst [vmem:[%s198 + $0x8] sm:$0xff] %v201
                %v203 = vld [vmem:[%s197 + $0x10] sm:$0xff]
                %204 = vst [vmem:[%s198 + $0x10] sm:$0xff] %v203
                %v205 = vld [vmem:[%s197 + $0x18] sm:$0xff]
                %206 = vst [vmem:[%s198 + $0x18] sm:$0xff] %v205
                %v207 = vld [vmem:[%s197 + $0x20] sm:$0xff]
                %208 = vst [vmem:[%s198 + $0x20] sm:$0xff] %v207
                %v209 = vld [vmem:[%s197 + $0x28] sm:$0xff]
                %210 = vst [vmem:[%s198 + $0x28] sm:$0xff] %v209
                %v211 = vld [vmem:[%s197 + $0x30] sm:$0xff]
                %212 = vst [vmem:[%s198 + $0x30] sm:$0xff] %v211
                %v213 = vld [vmem:[%s197 + $0x38] sm:$0xff]
                %214 = vst [vmem:[%s198 + $0x38] sm:$0xff] %v213
                %v215 = vld [vmem:[%s197 + $0x40] sm:$0xff]
                %216 = vst [vmem:[%s198 + $0x40] sm:$0xff] %v215
                %v217 = vld [vmem:[%s197 + $0x48] sm:$0xff]
                %218 = vst [vmem:[%s198 + $0x48] sm:$0xff] %v217
                %v219 = vld [vmem:[%s197 + $0x50] sm:$0xff]
                %220 = vst [vmem:[%s198 + $0x50] sm:$0xff] %v219
                %v221 = vld [vmem:[%s197 + $0x58] sm:$0xff]
                %222 = vst [vmem:[%s198 + $0x58] sm:$0xff] %v221
                %v223 = vld [vmem:[%s197 + $0x120] sm:$0xff]
                %224 = vst [vmem:[%s198 + $0x60] sm:$0xff] %v223
                %v225 = vld [vmem:[%s197 + $0x128] sm:$0xff]
                %226 = vst [vmem:[%s198 + $0x68] sm:$0xff] %v225
                %v227 = vld [vmem:[%s197 + $0x130] sm:$0xff]
                %228 = vst [vmem:[%s198 + $0x70] sm:$0xff] %v227
                %v229 = vld [vmem:[%s197 + $0x138] sm:$0xff]
                %230 = vst [vmem:[%s198 + $0x78] sm:$0xff] %v229
                %v231 = vld [vmem:[%s197 + $0x140] sm:$0xff]
                %232 = vst [vmem:[%s198 + $0x80] sm:$0xff] %v231
                %v233 = vld [vmem:[%s197 + $0x148] sm:$0xff]
                %234 = vst [vmem:[%s198 + $0x88] sm:$0xff] %v233
                %v235 = vld [vmem:[%s197 + $0x150] sm:$0xff]
                %236 = vst [vmem:[%s198 + $0x90] sm:$0xff] %v235
                %v237 = vld [vmem:[%s197 + $0x158] sm:$0xff]
                %238 = vst [vmem:[%s198 + $0x98] sm:$0xff] %v237
                %v239 = vld [vmem:[%s197 + $0x160] sm:$0xff]
                %240 = vst [vmem:[%s198 + $0xa0] sm:$0xff] %v239
                %v241 = vld [vmem:[%s197 + $0x168] sm:$0xff]
                %242 = vst [vmem:[%s198 + $0xa8] sm:$0xff] %v241
                %v243 = vld [vmem:[%s197 + $0x170] sm:$0xff]
                %244 = vst [vmem:[%s198 + $0xb0] sm:$0xff] %v243
                %v245 = vld [vmem:[%s197 + $0x178] sm:$0xff]
                %246 = vst [vmem:[%s198 + $0xb8] sm:$0xff] %v245
              $region53: #{tpu_custom_call.1} parent=47 // loop_footer
                %s196 = sadd.s32 1, %s192
              $region54: #{tpu_custom_call.1} parent=47 // loop_footer_branch
                %191 = sbr.rel target = $region50
              $region55: #{tpu_custom_call.1} parent=47 // loop_exit
                _
            $region48: #{tpu_custom_call.1} parent=39 // pred_fallthru
              _
          $region40: #{tpu_custom_call.1} parent=35 // pred_fallthru
            _
          %307 = vnop
        $region36: #{tpu_custom_call.1} parent=31 // pred_fallthru
          _
      $region32: #{tpu_custom_call.1} parent=5 // pred_fallthru
        _
      %p308 = scmp.le.s32.totalorder 1, %s12
      %p309 = scmp.lt.s32.totalorder %s12, 4
      %p310 = pnand %p308, %p309
      %p311 = pneg %p310
      // Predicated region
      $region71: #{tpu_custom_call.1} parent=5 // pred_check
        _
      $region72: #{tpu_custom_call.1} parent=5 // pred_check_branch
        %313 = sbr.rel (%p310) target = $region74
      $region73: #{tpu_custom_call.1} parent=5 // pred_region
        %s314 = ssub.s32 %s12, 1
        %s315 = sand.u32 %s25, 1
        %s316 = sand.u32 %s25, 1
        %s317 = smul.addr %s316, 192
        %s318 = scalar_lea.vmem [#allocation3], %s317
        // Predicated region
        $region75: #{tpu_custom_call.1} parent=73 // pred_check
          %p319 = pneg %p38
        $region76: #{tpu_custom_call.1} parent=73 // pred_check_branch
          %321 = sbr.rel (%p319) target = $region78
        $region77: #{tpu_custom_call.1} parent=73 // pred_region
          _
        $region78: #{tpu_custom_call.1} parent=73 // pred_fallthru
          _
        %s322 = sand.u32 %s25, 1
        %s323 = sand.u32 %s25, 1
        %s324 = smul.addr %s323, 192
        %s325 = scalar_lea.vmem [#allocation3], %s324
        %p326 = pneg %p38
        %p327 = pneg %p35
        %p328 = pneg %p59
        %p329 = pneg %p56
        %p330 = pneg %p80
        %p331 = pneg %p77
        %p332 = pneg %p101
        %p333 = pneg %p98
        %p334 = pneg %p122
        %p335 = pneg %p119
        %p336 = pneg %p143
        %p337 = pneg %p140
        %s338 = smul.u32 12, %s17
        %p339 = scmp.eq.s32.totalorder %s17, 0
        // Predicated region
        $region79: #{tpu_custom_call.1} parent=73 // pred_check
          %p340 = pneg %p339
        $region80: #{tpu_custom_call.1} parent=73 // pred_check_branch
          %342 = sbr.rel (%p340) target = $region82
        $region81: #{tpu_custom_call.1} parent=73 // pred_region
          %vm343 = vcmask 25600
          %344 = vst.msk [vmem:[#allocation2] sm:$0x3] %vm343, 0.0
        $region82: #{tpu_custom_call.1} parent=73 // pred_fallthru
          _
        %v345 = vld [vmem:[#allocation2] sm:$0x3]
        %v346 = vld [vmem:[%s318] sm:$0xff]
        %v347 = vld [vmem:[%s318 + $0x8] sm:$0xff]
        %v348 = vld [vmem:[%s318 + $0x10] sm:$0xff]
        %v349 = vld [vmem:[%s318 + $0x18] sm:$0xff]
        %v350 = vld [vmem:[%s318 + $0x20] sm:$0xff]
        %v351 = vld [vmem:[%s318 + $0x28] sm:$0xff]
        %v352 = vld [vmem:[%s318 + $0x30] sm:$0xff]
        %v353 = vld [vmem:[%s318 + $0x38] sm:$0xff]
        %v354 = vld [vmem:[%s318 + $0x40] sm:$0xff]
        %v355 = vld [vmem:[%s318 + $0x48] sm:$0xff]
        %v356 = vld [vmem:[%s318 + $0x50] sm:$0xff]
        %v357 = vld [vmem:[%s318 + $0x58] sm:$0xff]
        %v358 = vld [vmem:[%s318 + $0x60] sm:$0xff]
        %v359 = vld [vmem:[%s318 + $0x68] sm:$0xff]
        %v360 = vld [vmem:[%s318 + $0x70] sm:$0xff]
        %v361 = vld [vmem:[%s318 + $0x78] sm:$0xff]
        %v362 = vld [vmem:[%s318 + $0x80] sm:$0xff]
        %v363 = vld [vmem:[%s318 + $0x88] sm:$0xff]
        %v364 = vld [vmem:[%s318 + $0x90] sm:$0xff]
        %v365 = vld [vmem:[%s318 + $0x98] sm:$0xff]
        %v366 = vld [vmem:[%s318 + $0xa0] sm:$0xff]
        %v367 = vld [vmem:[%s318 + $0xa8] sm:$0xff]
        %v368 = vld [vmem:[%s318 + $0xb0] sm:$0xff]
        %v369 = vld [vmem:[%s318 + $0xb8] sm:$0xff]
        %vm370 = vcmask 31744
        %v371 = vsel %vm370, %v346, 0.0
        %v372 = vsel %vm370, %v347, 0.0
        %v373 = vadd.f32 %v371, %v372
        %v374 = vsel %vm370, %v348, 0.0
        %v375 = vadd.f32 %v373, %v374
        %v376 = vsel %vm370, %v349, 0.0
        %v377 = vadd.f32 %v375, %v376
        %v378 = vsel %vm370, %v350, 0.0
        %v379 = vadd.f32 %v377, %v378
        %v380 = vsel %vm370, %v351, 0.0
        %v381 = vadd.f32 %v379, %v380
        %v382 = vsel %vm370, %v352, 0.0
        %v383 = vadd.f32 %v381, %v382
        %v384 = vsel %vm370, %v353, 0.0
        %v385 = vadd.f32 %v383, %v384
        %v386 = vsel %vm370, %v354, 0.0
        %v387 = vadd.f32 %v385, %v386
        %v388 = vsel %vm370, %v355, 0.0
        %v389 = vadd.f32 %v387, %v388
        %v390 = vsel %vm370, %v356, 0.0
        %v391 = vadd.f32 %v389, %v390
        %v392 = vsel %vm370, %v357, 0.0
        %v393 = vadd.f32 %v391, %v392
        %v394 = vrot.slane %v393, 4
        %v395 = vadd.f32 %v393, %v394
        %v396 = vrot.slane %v395, 2
        %v397 = vadd.f32 %v395, %v396
        %v398 = vrot.slane %v397, 1
        %v399 = vadd.f32 %v397, %v398
        %v400 = vsel %vm370, %v358, 0.0
        %v401 = vsel %vm370, %v359, 0.0
        %v402 = vadd.f32 %v400, %v401
        %v403 = vsel %vm370, %v360, 0.0
        %v404 = vadd.f32 %v402, %v403
        %v405 = vsel %vm370, %v361, 0.0
        %v406 = vadd.f32 %v404, %v405
        %v407 = vsel %vm370, %v362, 0.0
        %v408 = vadd.f32 %v406, %v407
        %v409 = vsel %vm370, %v363, 0.0
        %v410 = vadd.f32 %v408, %v409
        %v411 = vsel %vm370, %v364, 0.0
        %v412 = vadd.f32 %v410, %v411
        %v413 = vsel %vm370, %v365, 0.0
        %v414 = vadd.f32 %v412, %v413
        %v415 = vsel %vm370, %v366, 0.0
        %v416 = vadd.f32 %v414, %v415
        %v417 = vsel %vm370, %v367, 0.0
        %v418 = vadd.f32 %v416, %v417
        %v419 = vsel %vm370, %v368, 0.0
        %v420 = vadd.f32 %v418, %v419
        %v421 = vsel %vm370, %v369, 0.0
        %v422 = vadd.f32 %v420, %v421
        %v423 = vrot.slane %v422, 4
        %v424 = vadd.f32 %v422, %v423
        %v425 = vrot.slane %v424, 2
        %v426 = vadd.f32 %v424, %v425
        %v427 = vrot.slane %v426, 1
        %v428 = vadd.f32 %v426, %v427
        %vm431 = vcmask 1041409
        %v432 = vsel %vm431, %v428, %v399
        %v434 = vadd.f32 %v345, %v432
        %vm435 = vcmask 25600
        %436 = vst.msk [vmem:[#allocation2] sm:$0x3] %vm435, %v434
        %p437 = scmp.eq.s32.totalorder %s17, 2
        // Predicated region
        $region83: #{tpu_custom_call.1} parent=73 // pred_check
          %p438 = pneg %p437
        $region84: #{tpu_custom_call.1} parent=73 // pred_check_branch
          %440 = sbr.rel (%p438) target = $region86
        $region85: #{tpu_custom_call.1} parent=73 // pred_region
          %v441 = vld [vmem:[#allocation2] sm:$0x3]
          %v442 = vmul.f32 %v441, 0.00390625
          %v443 = vld [vmem:[%s1] sm:$0xf]
          %v444 = vld [vmem:[%s2] sm:$0x1]
          %v446 = vlaneseq
          %v447 = vshrl.u32 %v446, 7
          %v448 = vsub.s32 0, %v447
          %v449 = vrot.slane %v444, %v448
          %v452 = vsel %vm370, %v442, 0
          %vm454 = vcmask 1043456
          %v456 = vsel %vm454, %v443, 0
          %458 = vmatprep.subr.mxu0 0.0
          %459 = vmatpush1.msra.mxu0 %v456
          %460 = vmatprep.subr.mxu0 0.0
          %461 = vmatpush1.msra.mxu0 0.0
          %462 = vmatprep.subr.mxu0 0.0
          %463 = vmatpush1.msra.mxu0 0.0
          %464 = vmatprep.subr.mxu0 0.0
          %465 = vmatpush1.msra.mxu0 0.0
          %466 = vmatprep.subr.mxu0 0.0
          %467 = vmatpush1.msra.mxu0 0.0
          %468 = vmatprep.subr.mxu0 0.0
          %469 = vmatpush1.msra.mxu0 0.0
          %470 = vmatprep.subr.mxu0 0.0
          %471 = vmatpush1.msra.mxu0 0.0
          %472 = vmatprep.subr.mxu0 0.0
          %473 = vmatpush1.msra.mxu0 0.0
          %474 = vmatprep.subr.mxu0 0.0
          %475 = vmatpush1.msra.mxu0 0.0
          %476 = vmatprep.subr.mxu0 0.0
          %477 = vmatpush1.msra.mxu0 0.0
          %478 = vmatprep.subr.mxu0 0.0
          %479 = vmatpush1.msra.mxu0 0.0
          %480 = vmatprep.subr.mxu0 0.0
          %481 = vmatpush1.msra.mxu0 0.0
          %482 = vmatprep.subr.mxu0 0.0
          %483 = vmatpush1.msra.mxu0 0.0
          %484 = vmatprep.subr.mxu0 0.0
          %485 = vmatpush1.msra.mxu0 0.0
          %486 = vmatprep.subr.mxu0 0.0
          %487 = vmatpush1.msra.mxu0 0.0
          %488 = vmatprep.subr.mxu0 0.0
          %489 = vmatpush1.msra.mxu0 0.0
          %490 = vmatprep.subr.mxu0 0.0
          %491 = vmatpush1.msra.mxu0 0.0
          %492 = vmatprep.subr.mxu0 0.0
          %493 = vmatpush1.msra.mxu0 0.0
          %494 = vmatprep.subr.mxu0 0.0
          %495 = vmatpush1.msra.mxu0 0.0
          %496 = vmatprep.subr.mxu0 0.0
          %497 = vmatpush1.msra.mxu0 0.0
          %498 = vmatprep.subr.mxu0 0.0
          %499 = vmatpush1.msra.mxu0 0.0
          %500 = vmatprep.subr.mxu0 0.0
          %501 = vmatpush1.msra.mxu0 0.0
          %502 = vmatprep.subr.mxu0 0.0
          %503 = vmatpush1.msra.mxu0 0.0
          %504 = vmatprep.subr.mxu0 0.0
          %505 = vmatpush1.msra.mxu0 0.0
          %506 = vmatprep.subr.mxu0 0.0
          %507 = vmatpush1.msra.mxu0 0.0
          %508 = vmatprep.subr.mxu0 0.0
          %509 = vmatpush1.msra.mxu0 0.0
          %510 = vmatprep.subr.mxu0 0.0
          %511 = vmatpush1.msra.mxu0 0.0
          %512 = vmatprep.subr.mxu0 0.0
          %513 = vmatpush1.msra.mxu0 0.0
          %514 = vmatprep.subr.mxu0 0.0
          %515 = vmatpush1.msra.mxu0 0.0
          %516 = vmatprep.subr.mxu0 0.0
          %517 = vmatpush1.msra.mxu0 0.0
          %518 = vmatprep.subr.mxu0 0.0
          %519 = vmatpush1.msra.mxu0 0.0
          %520 = vmatprep.subr.mxu0 0.0
          %521 = vmatpush1.msra.mxu0 0.0
          %522 = vmatprep.mubr.f32.mxu0 0.0
          %523 = vmatmul.mubr.f32.gmra.mrb[0].mxu0 %v452
          %v524 = vpop.f32.mrb[0].mxu0
          %v525 = vadd.f32 %v449, %v524
          %v526 = vpop.f32.mrb[0].mxu0
          %527 = vdwg.mxu0
          %v528 = vmax.f32 %v525, 0.0
          %v529 = vld [vmem:[%s3] sm:$0xff]
          %v530 = vld [vmem:[%s3 + $0x8] sm:$0xff]
          %v531 = vld [vmem:[%s3 + $0x10] sm:$0xff]
          %v532 = vld [vmem:[%s4] sm:$0x1]
          %v534 = vlaneseq
          %v535 = vshrl.u32 %v534, 7
          %v536 = vsub.s32 0, %v535
          %v537 = vrot.slane %v532, %v536
          %vm539 = vcmask 195584
          %v541 = vsel %vm539, %v528, 0
          %543 = vmatprep.subr.mxu0 0.0
          %544 = vmatpush1.msra.mxu0 %v529
          %545 = vmatprep.subr.mxu0 0.0
          %546 = vmatpush1.msra.mxu0 %v530
          %547 = vmatprep.subr.mxu0 0.0
          %548 = vmatpush1.msra.mxu0 %v531
          %549 = vmatprep.subr.mxu0 0.0
          %550 = vmatpush1.msra.mxu0 0.0
          %551 = vmatprep.subr.mxu0 0.0
          %552 = vmatpush1.msra.mxu0 0.0
          %553 = vmatprep.subr.mxu0 0.0
          %554 = vmatpush1.msra.mxu0 0.0
          %555 = vmatprep.subr.mxu0 0.0
          %556 = vmatpush1.msra.mxu0 0.0
          %557 = vmatprep.subr.mxu0 0.0
          %558 = vmatpush1.msra.mxu0 0.0
          %559 = vmatprep.subr.mxu0 0.0
          %560 = vmatpush1.msra.mxu0 0.0
          %561 = vmatprep.subr.mxu0 0.0
          %562 = vmatpush1.msra.mxu0 0.0
          %563 = vmatprep.subr.mxu0 0.0
          %564 = vmatpush1.msra.mxu0 0.0
          %565 = vmatprep.subr.mxu0 0.0
          %566 = vmatpush1.msra.mxu0 0.0
          %567 = vmatprep.subr.mxu0 0.0
          %568 = vmatpush1.msra.mxu0 0.0
          %569 = vmatprep.subr.mxu0 0.0
          %570 = vmatpush1.msra.mxu0 0.0
          %571 = vmatprep.subr.mxu0 0.0
          %572 = vmatpush1.msra.mxu0 0.0
          %573 = vmatprep.subr.mxu0 0.0
          %574 = vmatpush1.msra.mxu0 0.0
          %575 = vmatprep.subr.mxu0 0.0
          %576 = vmatpush1.msra.mxu0 0.0
          %577 = vmatprep.subr.mxu0 0.0
          %578 = vmatpush1.msra.mxu0 0.0
          %579 = vmatprep.subr.mxu0 0.0
          %580 = vmatpush1.msra.mxu0 0.0
          %581 = vmatprep.subr.mxu0 0.0
          %582 = vmatpush1.msra.mxu0 0.0
          %583 = vmatprep.subr.mxu0 0.0
          %584 = vmatpush1.msra.mxu0 0.0
          %585 = vmatprep.subr.mxu0 0.0
          %586 = vmatpush1.msra.mxu0 0.0
          %587 = vmatprep.subr.mxu0 0.0
          %588 = vmatpush1.msra.mxu0 0.0
          %589 = vmatprep.subr.mxu0 0.0
          %590 = vmatpush1.msra.mxu0 0.0
          %591 = vmatprep.subr.mxu0 0.0
          %592 = vmatpush1.msra.mxu0 0.0
          %593 = vmatprep.subr.mxu0 0.0
          %594 = vmatpush1.msra.mxu0 0.0
          %595 = vmatprep.subr.mxu0 0.0
          %596 = vmatpush1.msra.mxu0 0.0
          %597 = vmatprep.subr.mxu0 0.0
          %598 = vmatpush1.msra.mxu0 0.0
          %599 = vmatprep.subr.mxu0 0.0
          %600 = vmatpush1.msra.mxu0 0.0
          %601 = vmatprep.subr.mxu0 0.0
          %602 = vmatpush1.msra.mxu0 0.0
          %603 = vmatprep.subr.mxu0 0.0
          %604 = vmatpush1.msra.mxu0 0.0
          %605 = vmatprep.subr.mxu0 0.0
          %606 = vmatpush1.msra.mxu0 0.0
          %607 = vmatprep.mubr.f32.mxu0 0.0
          %608 = vmatmul.mubr.f32.gmra.mrb[0].mxu0 %v541
          %v609 = vpop.f32.mrb[0].mxu0
          %v610 = vadd.f32 %v537, %v609
          %v611 = vpop.f32.mrb[0].mxu0
          %612 = vdwg.mxu0
          %v613 = vsel %vm435, %v610, -inf
          %614 = vmax.xlane.f32.xlu0 %v613
          %v615 = vpop.xlane.xlu0 %614
          %v616 = vsub.f32 %v610, %v615
          %v617 = vmul.f32 %v616, 1.442695
          %v618 = vpow.pop %v617
          %v619 = vsel %vm435, %v618, 0.0
          %620 = vadd.xlane.f32.xlu0 %v619
          %v621 = vpop.xlane.xlu0 %620
          %v622 = vrcp.pop %v621
          %v623 = vmul.f32 %v618, %v622
          %624 = vst.msk [vmem:[#allocation4] sm:$0x3] %vm435, %v623
          %vm625 = vcmask 58400
          %v626 = vsel %vm625, %v610, -inf
          %627 = vmax.xlane.f32.xlu0 %v626
          %v628 = vpop.xlane.xlu0 %627
          %v629 = vsub.f32 %v610, %v628
          %v630 = vmul.f32 %v629, 1.442695
          %v631 = vpow.pop %v630
          %633 = vrot.lane.b32.xlu0 %v631, 124
          %v634 = vpop.permute.xlu0 %633
          %v636 = vsel %vm435, %v634, 0.0
          %637 = vadd.xlane.f32.xlu0 %v636
          %v638 = vpop.xlane.xlu0 %637
          %v639 = vrcp.pop %v638
          %v640 = vmul.f32 %v631, %v639
          %641 = vst.msk [vmem:[#allocation4] sm:$0x3] %vm625, %v640
          %vm642 = vcmask 91200
          %v643 = vsel %vm642, %v610, -inf
          %644 = vmax.xlane.f32.xlu0 %v643
          %v645 = vpop.xlane.xlu0 %644
          %v646 = vsub.f32 %v610, %v645
          %v647 = vmul.f32 %v646, 1.442695
          %v648 = vpow.pop %v647
          %650 = vrot.lane.b32.xlu0 %v648, 120
          %v651 = vpop.permute.xlu0 %650
          %v653 = vsel %vm435, %v651, 0.0
          %654 = vadd.xlane.f32.xlu0 %v653
          %v655 = vpop.xlane.xlu0 %654
          %v656 = vrcp.pop %v655
          %v657 = vmul.f32 %v648, %v656
          %658 = vst.msk [vmem:[#allocation4] sm:$0x3] %vm642, %v657
        $region86: #{tpu_custom_call.1} parent=73 // pred_fallthru
          _
        // Predicated region
        $region87: #{tpu_custom_call.1} parent=73 // pred_check
          %p659 = pneg %p140
        $region88: #{tpu_custom_call.1} parent=73 // pred_check_branch
          %661 = sbr.rel (%p659) target = $region90
        $region89: #{tpu_custom_call.1} parent=73 // pred_region
          %s663 = ssub.s32 32, 32
          %664 = vsyncadd [#allocation5], %s663
          %s666 = sshll.u32 [#allocation4], 4
          %s667 = int_to_ptr.vmem [resolvable:$true] %s666
          %669 = dma.vmem_to_hbm [thread:$0]  %s667, 32, %s5, [#allocation5]
        $region90: #{tpu_custom_call.1} parent=73 // pred_fallthru
          _
        // Predicated region
        $region91: #{tpu_custom_call.1} parent=73 // pred_check
          %p670 = pneg %p140
        $region92: #{tpu_custom_call.1} parent=73 // pred_check_branch
          %672 = sbr.rel (%p670) target = $region94
        $region93: #{tpu_custom_call.1} parent=73 // pred_region
          %673 = dma.done [#allocation5], 32
        $region94: #{tpu_custom_call.1} parent=73 // pred_fallthru
          _
      $region74: #{tpu_custom_call.1} parent=5 // pred_fallthru
        _
      %p674 = scmp.le.s32.totalorder 2, %s12
      // Predicated region
      $region95: #{tpu_custom_call.1} parent=5 // pred_check
        %p675 = pneg %p674
      $region96: #{tpu_custom_call.1} parent=5 // pred_check_branch
        %677 = sbr.rel (%p675) target = $region98
      $region97: #{tpu_custom_call.1} parent=5 // pred_region
        %s678 = ssub.s32 %s12, 2
      $region98: #{tpu_custom_call.1} parent=5 // pred_fallthru
        _
    $region6: #{tpu_custom_call.1} parent=1 // loop_footer
      %s16 = sadd.s32 1, %s12
    $region7: #{tpu_custom_call.1} parent=1 // loop_footer_branch
      %11 = sbr.rel target = $region3
    $region8: #{tpu_custom_call.1} parent=1 // loop_exit
      _
    %679 = vsyncpa [#allocation5], 1
    %s680 = scalar_lea.sflag [#allocation5], 1
    %681 = vsyncpa %s680, 1

</llo_original>
